<compile_context>
chip_gen: v5e
topology: v5e:2x2
jax: 0.10.0
libtpu: 0.0.40
codegen_flags: <defaults>
</compile_context>

<pallas_src>
import functools

import jax
import jax.numpy as jnp
from jax.experimental import pallas as pl
from jax.experimental.pallas import tpu as pltpu


IN_DIM = 128
OUT_DIM = 992
OUT_DIM_PAD = 1024   # next multiple of 128 (dense lane tiles, dense weight DMA)


# --------------------------------------------------------------------------
# Kernels
# --------------------------------------------------------------------------

def _linear_kernel_single(x_ref, wt_ref, b_ref, o_ref):
    # Single-block kernel (no grid): everything resident in VMEM at once.
    # x_ref:  (B, IN_DIM)             f32
    # wt_ref: (IN_DIM, OUT_DIM_PAD)   bf16  (pre-transposed, zero-padded)
    # b_ref:  (1, OUT_DIM_PAD)        f32
    # o_ref:  (B, OUT_DIM)            f32   (un-padded output, written directly)
    x_bf16 = x_ref[...].astype(jnp.bfloat16)
    acc = jnp.dot(x_bf16, wt_ref[...], preferred_element_type=jnp.float32)
    y = acc + b_ref[...]
    # Drop the zero-padded columns in VMEM (static slice) -> no external un-pad op.
    o_ref[...] = y[:, : o_ref.shape[1]].astype(o_ref.dtype)


def _linear_kernel_blocked(x_ref, wt_ref, b_ref, o_ref):
    # Blocked kernel (v7x, 2 parallel blocks of 512 so both TCs stream weight).
    # x_ref:  (B, IN_DIM)          f32
    # wt_ref: (IN_DIM, OUT_BLOCK)  bf16
    # b_ref:  (1, OUT_BLOCK)       f32
    # o_ref:  (B, OUT_BLOCK)       f32
    x_bf16 = x_ref[...].astype(jnp.bfloat16)
    acc = jnp.dot(x_bf16, wt_ref[...], preferred_element_type=jnp.float32)
    o_ref[...] = (acc + b_ref[...]).astype(o_ref.dtype)


# --------------------------------------------------------------------------
# Parameter prep (one-time, offline)
# --------------------------------------------------------------------------

def prepare_params(w: jax.Array, b: jax.Array):
    """Transpose, zero-pad to OUT_DIM_PAD lanes, cast weight to bf16.

    w: (out_dim, in_dim) f32  -> wt_p: (in_dim, OUT_DIM_PAD) bf16
    b: (out_dim,)        f32  -> b_p:  (1, OUT_DIM_PAD)      f32
    """
    out_dim, in_dim = w.shape
    pad = OUT_DIM_PAD - out_dim
    wt_p = jnp.pad(w.T, ((0, 0), (0, pad))).astype(jnp.bfloat16)
    b_p = jnp.pad(b, (0, pad)).reshape(1, OUT_DIM_PAD).astype(jnp.float32)
    return wt_p, b_p


# --------------------------------------------------------------------------
# Host wrapper
# --------------------------------------------------------------------------

@functools.lru_cache(maxsize=1)
def _num_out_blocks() -> int:
    """2 blocks on v7x (2 TensorCores/chip), 1 block everywhere else."""
    try:
        kind = jax.devices()[0].device_kind.lower()
    except Exception:  # pragma: no cover - conservative fallback
        return 1
    if "v7" in kind or "7x" in kind:
        return 2
    return 1


def _make_cost(batch: int, in_dim: int, out_pad: int) -> pl.CostEstimate:
    return pl.CostEstimate(
        flops=2 * batch * in_dim * out_pad,
        transcendentals=0,
        bytes_accessed=(in_dim * out_pad * 2        # bf16 weight stream (dominant)
                        + batch * in_dim * 4        # x read
                        + out_pad * 4               # bias read
                        + batch * out_pad * 4),     # y write
    )


@functools.partial(jax.jit, static_argnames=("out_dim", "n_blocks"))
def _linear_pallas_impl(x, wt_p, b_p, out_dim: int, n_blocks: int):
    B, in_dim = x.shape
    in_dim_w, out_pad = wt_p.shape
    assert in_dim == in_dim_w and out_pad == OUT_DIM_PAD
    cost = _make_cost(B, in_dim, out_pad)

    if n_blocks == 1:
        # Single block, no grid: one weight DMA, one matmul, un-padded output
        # written straight from the kernel (no external slice op).
        return pl.pallas_call(
            _linear_kernel_single,
            out_shape=jax.ShapeDtypeStruct((B, out_dim), x.dtype),
            cost_estimate=cost,
        )(x, wt_p, b_p)

    # v7x path: split the padded out_dim across n_blocks "parallel" grid steps
    # so both TensorCores each stream half of the weight.
    out_block = out_pad // n_blocks
    y_pad = pl.pallas_call(
        _linear_kernel_blocked,
        out_shape=jax.ShapeDtypeStruct((B, out_pad), x.dtype),
        grid_spec=pltpu.PrefetchScalarGridSpec(
            num_scalar_prefetch=0,
            grid=(n_blocks,),
            in_specs=[
                pl.BlockSpec((B, in_dim), lambda j: (0, 0)),
                pl.BlockSpec((in_dim, out_block), lambda j: (0, j)),
                pl.BlockSpec((1, out_block), lambda j: (0, j)),
            ],
            out_specs=pl.BlockSpec((B, out_block), lambda j: (0, j)),
        ),
        compiler_params=pltpu.CompilerParams(
            dimension_semantics=("parallel",),
        ),
        cost_estimate=cost,
    )(x, wt_p, b_p)
    # Tiny un-pad (8 x 992 f32); only paid on the multi-core path.
    return y_pad[:, :out_dim]


def linear_pallas(x: jax.Array, wt_p: jax.Array, b_p: jax.Array,
                  out_dim: int = OUT_DIM) -> jax.Array:
    """y = x @ W^T + b using pre-prepared (transposed/padded/bf16) weight."""
    return _linear_pallas_impl(x, wt_p, b_p, out_dim, _num_out_blocks())


def reference_linear(x, w, b):
    return x @ w.T + b


# --------------------------------------------------------------------------
# Self-test
# --------------------------------------------------------------------------

if __name__ == "__main__":
    in_dim, out_dim = IN_DIM, OUT_DIM
    batch = 8

    key = jax.random.PRNGKey(0)
    kx, kw, kb = jax.random.split(key, 3)

    # Deterministic parameter init (mimics nn.Linear's U(-1/sqrt(in), 1/sqrt(in)))
    bound = 1.0 / (in_dim ** 0.5)
    w = jax.random.uniform(kw, (out_dim, in_dim), jnp.float32, -bound, bound)
    b = jax.random.uniform(kb, (out_dim,), jnp.float32, -bound, bound)
    x = jax.random.normal(kx, (batch, in_dim), jnp.float32)

    # One-time weight prep (transpose + pad + bf16 cast), not per-call.
    wt_p, b_p = prepare_params(w, b)
    wt_p, b_p = jax.block_until_ready((wt_p, b_p))

    y = linear_pallas(x, wt_p, b_p, out_dim)
    y = jax.block_until_ready(y)

    y_ref = reference_linear(x, w, b)
    assert y.shape == (batch, out_dim)
    # bf16 inputs + f32 accumulate over K=128: loosen tolerance vs f32 ref.
    assert jnp.allclose(y, y_ref, atol=2e-2, rtol=2e-2), "mismatch vs reference"

    print("KERNEL_OK")
</pallas_src>

<mosaic_0001>
module attributes {stable_mosaic.version = 11 : i64} {
  func.func @_linear_kernel_single(%arg0: memref<8x128xf32, #tpu.memory_space<vmem>>, %arg1: memref<128x1024xbf16, #tpu.memory_space<vmem>>, %arg2: memref<1x1024xf32, #tpu.memory_space<vmem>>, %arg3: memref<8x992xf32, #tpu.memory_space<vmem>>) attributes {dimension_semantics = [], scalar_prefetch = 0 : i64, scratch_operands = 0 : i64, tpu.core_type = #tpu.core_type<tc>} {
    %c0 = arith.constant 0 : index
    %c0_0 = arith.constant 0 : index
    %0 = vector.load %arg0[%c0, %c0_0] : memref<8x128xf32, #tpu.memory_space<vmem>>, vector<8x128xf32>
    %1 = arith.truncf %0 : vector<8x128xf32> to vector<8x128xbf16>
    %c0_1 = arith.constant 0 : index
    %c0_2 = arith.constant 0 : index
    %2 = vector.load %arg1[%c0_1, %c0_2] : memref<128x1024xbf16, #tpu.memory_space<vmem>>, vector<128x1024xbf16>
    %cst = arith.constant dense<0.000000e+00> : vector<8x1024xf32>
    %3 = tpu.matmul %1, %2, %cst {dimension_numbers = #tpu.dot_dimension_numbers<[1], [0], [0], [1], [0, 0, 1, 1], [], []>} : vector<8x128xbf16>, vector<128x1024xbf16>, vector<8x1024xf32> -> vector<8x1024xf32>
    %c0_3 = arith.constant 0 : index
    %c0_4 = arith.constant 0 : index
    %4 = vector.load %arg2[%c0_3, %c0_4] : memref<1x1024xf32, #tpu.memory_space<vmem>>, vector<1x1024xf32>
    %5 = vector.broadcast %4 : vector<1x1024xf32> to vector<8x1024xf32>
    %6 = arith.addf %3, %5 : vector<8x1024xf32>
    %7 = vector.extract_strided_slice %6 {offsets = [0, 0], sizes = [8, 992], strides = [1, 1]} : vector<8x1024xf32> to vector<8x992xf32>
    %c0_5 = arith.constant 0 : index
    %c0_6 = arith.constant 0 : index
    %8 = vector.load %arg3[%c0_5, %c0_6] : memref<8x992xf32, #tpu.memory_space<vmem>>, vector<8x992xf32>
    tpu.vector_store %arg3[%c0_5, %c0_6], %7 {strides = array<i32>} : memref<8x992xf32, #tpu.memory_space<vmem>>, vector<8x992xf32>,
    return
  }
}

</mosaic_0001>

<llo_original>
// kernel: _linear_pallas_impl.1
$region0: #{_linear_pallas_impl.1}
  #allocation0 [shape = 'u32[]', space=smem, size = 0x4, offset = 0x4, fixed_abs, tag = 'smem constant byte address 0x4 - core index']
  #allocation1 [shape = 'u32[72,128]{1,0:T(1,128)}', space=vmem, size = 0x9000, scoped, tag = 'internal scratch']
  %s0 = inlined_call_operand.hbm [shape: f32[8,128], index: 0, kind: input, shape index: {}]
  %s1 = inlined_call_operand.hbm [shape: bf16[128,1024], index: 1, kind: input, shape index: {}]
  %s2 = inlined_call_operand.hbm [shape: f32[1,1024], index: 2, kind: input, shape index: {}]
  %s3 = inlined_call_operand.hbm [shape: f32[8,992], index: 3, kind: output, shape index: {}]
  %s4 = sld [smem:[#allocation0]]
  $region34: #{_linear_pallas_impl.1} parent=0
    _
  %s6 = ssub.s32 1, %s4
  %s7 = scalar_select 0, %s6, %s4
  $region1: #{_linear_pallas_impl.1} parent=0
    #allocation2 [shape = 'u8[4096]{0}', space=vmem, size = 0x1000, scoped, tag = 'input window, operand 0, single buffered']
    #allocation3 [shape = 's32[1]{0}', space=sflag, size = 0x4, scoped, tag = 'scoped memory for _linear_pallas_impl.1']
    #allocation4 [shape = 's32[1]{0}', space=sflag, size = 0x4, scoped, tag = 'scoped memory for _linear_pallas_impl.1']
    #allocation5 [shape = 'u8[262144]{0}', space=vmem, size = 0x40000, scoped, tag = 'input window, operand 1, single buffered']
    #allocation6 [shape = 's32[1]{0}', space=sflag, size = 0x4, scoped, tag = 'scoped memory for _linear_pallas_impl.1']
    #allocation7 [shape = 'u8[4096]{0}', space=vmem, size = 0x1000, scoped, tag = 'input window, operand 2, single buffered']
    #allocation8 [shape = 'u8[32768]{0}', space=vmem, size = 0x8000, scoped, tag = 'output window, operand 0, single buffered']
    %8 = vsyncpa [#allocation3], 0
    %9 = vsyncpa [#allocation6], 0
    %10 = vsyncpa [#allocation4], 0
    // Predicated region
    $region2: #{_linear_pallas_impl.1} parent=1 // pred_check
      _
    $region3: #{_linear_pallas_impl.1} parent=1 // pred_check_branch
      %12 = sbr.rel (0) target = $region5
    $region4: #{_linear_pallas_impl.1} parent=1 // pred_region
      %14 = vsyncadd [#allocation3], 0
      %s16 = sshll.u32 %s0, 4
      %s17 = int_to_ptr.hbm [resolvable:$true] %s16
      %s18 = sshll.u32 [#allocation2], 4
      %s19 = int_to_ptr.vmem [resolvable:$true] %s18
      %21 = dma.hbm_to_vmem [thread:$0]  %s17, 128, %s19, [#allocation3]
    $region5: #{_linear_pallas_impl.1} parent=1 // pred_fallthru
      _
    // Predicated region
    $region6: #{_linear_pallas_impl.1} parent=1 // pred_check
      _
    $region7: #{_linear_pallas_impl.1} parent=1 // pred_check_branch
      %23 = sbr.rel (0) target = $region9
    $region8: #{_linear_pallas_impl.1} parent=1 // pred_region
      %25 = vsyncadd [#allocation6], 0
      %s26 = sshll.u32 %s1, 4
      %s27 = int_to_ptr.hbm [resolvable:$true] %s26
      %s28 = sshll.u32 [#allocation5], 4
      %s29 = int_to_ptr.vmem [resolvable:$true] %s28
      %34 = dma.hbm_to_vmem [thread:$0]  %s27, 8192, %s29, [#allocation6], 512, 512, 32
    $region9: #{_linear_pallas_impl.1} parent=1 // pred_fallthru
      _
    // Predicated region
    $region10: #{_linear_pallas_impl.1} parent=1 // pred_check
      _
    $region11: #{_linear_pallas_impl.1} parent=1 // pred_check_branch
      %36 = sbr.rel (0) target = $region13
    $region12: #{_linear_pallas_impl.1} parent=1 // pred_region
      %38 = vsyncadd [#allocation6], 0
      %s40 = sshll.u32 %s2, 4
      %s41 = int_to_ptr.hbm [resolvable:$true] %s40
      %s42 = sshll.u32 [#allocation7], 4
      %s43 = int_to_ptr.vmem [resolvable:$true] %s42
      %45 = dma.hbm_to_vmem [thread:$0]  %s41, 128, %s43, [#allocation6]
    $region13: #{_linear_pallas_impl.1} parent=1 // pred_fallthru
      _
    // Predicated region
    $region14: #{_linear_pallas_impl.1} parent=1 // pred_check
      _
    $region15: #{_linear_pallas_impl.1} parent=1 // pred_check_branch
      %47 = sbr.rel (0) target = $region17
    $region16: #{_linear_pallas_impl.1} parent=1 // pred_region
      %49 = dma.done [#allocation3], 128
    $region17: #{_linear_pallas_impl.1} parent=1 // pred_fallthru
      _
    // Predicated region
    $region18: #{_linear_pallas_impl.1} parent=1 // pred_check
      _
    $region19: #{_linear_pallas_impl.1} parent=1 // pred_check_branch
      %51 = sbr.rel (0) target = $region21
    $region20: #{_linear_pallas_impl.1} parent=1 // pred_region
      %53 = dma.done [#allocation6], 8192
    $region21: #{_linear_pallas_impl.1} parent=1 // pred_fallthru
      _
    // Predicated region
    $region22: #{_linear_pallas_impl.1} parent=1 // pred_check
      _
    $region23: #{_linear_pallas_impl.1} parent=1 // pred_check_branch
      %55 = sbr.rel (0) target = $region25
    $region24: #{_linear_pallas_impl.1} parent=1 // pred_region
      %57 = dma.done [#allocation6], 128
    $region25: #{_linear_pallas_impl.1} parent=1 // pred_fallthru
      _
    %v58 = vld [vmem:[#allocation2] sm:$0xff]
    %v59 = vpack.c.bf16 %v58, %v58
    %v60 = vld [vmem:[#allocation5] sm:$0xff]
    %v61 = vld [vmem:[#allocation5 + $0x8] sm:$0xff]
    %v62 = vld [vmem:[#allocation5 + $0x10] sm:$0xff]
    %v63 = vld [vmem:[#allocation5 + $0x18] sm:$0xff]
    %v64 = vld [vmem:[#allocation5 + $0x20] sm:$0xff]
    %v65 = vld [vmem:[#allocation5 + $0x28] sm:$0xff]
    %v66 = vld [vmem:[#allocation5 + $0x30] sm:$0xff]
    %v67 = vld [vmem:[#allocation5 + $0x38] sm:$0xff]
    %v68 = vld [vmem:[#allocation5 + $0x40] sm:$0xff]
    %v69 = vld [vmem:[#allocation5 + $0x48] sm:$0xff]
    %v70 = vld [vmem:[#allocation5 + $0x50] sm:$0xff]
    %v71 = vld [vmem:[#allocation5 + $0x58] sm:$0xff]
    %v72 = vld [vmem:[#allocation5 + $0x60] sm:$0xff]
    %v73 = vld [vmem:[#allocation5 + $0x68] sm:$0xff]
    %v74 = vld [vmem:[#allocation5 + $0x70] sm:$0xff]
    %v75 = vld [vmem:[#allocation5 + $0x78] sm:$0xff]
    %v76 = vld [vmem:[#allocation5 + $0x80] sm:$0xff]
    %v77 = vld [vmem:[#allocation5 + $0x88] sm:$0xff]
    %v78 = vld [vmem:[#allocation5 + $0x90] sm:$0xff]
    %v79 = vld [vmem:[#allocation5 + $0x98] sm:$0xff]
    %v80 = vld [vmem:[#allocation5 + $0xa0] sm:$0xff]
    %v81 = vld [vmem:[#allocation5 + $0xa8] sm:$0xff]
    %v82 = vld [vmem:[#allocation5 + $0xb0] sm:$0xff]
    %v83 = vld [vmem:[#allocation5 + $0xb8] sm:$0xff]
    %v84 = vld [vmem:[#allocation5 + $0xc0] sm:$0xff]
    %v85 = vld [vmem:[#allocation5 + $0xc8] sm:$0xff]
    %v86 = vld [vmem:[#allocation5 + $0xd0] sm:$0xff]
    %v87 = vld [vmem:[#allocation5 + $0xd8] sm:$0xff]
    %v88 = vld [vmem:[#allocation5 + $0xe0] sm:$0xff]
    %v89 = vld [vmem:[#allocation5 + $0xe8] sm:$0xff]
    %v90 = vld [vmem:[#allocation5 + $0xf0] sm:$0xff]
    %v91 = vld [vmem:[#allocation5 + $0xf8] sm:$0xff]
    %v92 = vld [vmem:[#allocation5 + $0x100] sm:$0xff]
    %v93 = vld [vmem:[#allocation5 + $0x108] sm:$0xff]
    %v94 = vld [vmem:[#allocation5 + $0x110] sm:$0xff]
    %v95 = vld [vmem:[#allocation5 + $0x118] sm:$0xff]
    %v96 = vld [vmem:[#allocation5 + $0x120] sm:$0xff]
    %v97 = vld [vmem:[#allocation5 + $0x128] sm:$0xff]
    %v98 = vld [vmem:[#allocation5 + $0x130] sm:$0xff]
    %v99 = vld [vmem:[#allocation5 + $0x138] sm:$0xff]
    %v100 = vld [vmem:[#allocation5 + $0x140] sm:$0xff]
    %v101 = vld [vmem:[#allocation5 + $0x148] sm:$0xff]
    %v102 = vld [vmem:[#allocation5 + $0x150] sm:$0xff]
    %v103 = vld [vmem:[#allocation5 + $0x158] sm:$0xff]
    %v104 = vld [vmem:[#allocation5 + $0x160] sm:$0xff]
    %v105 = vld [vmem:[#allocation5 + $0x168] sm:$0xff]
    %v106 = vld [vmem:[#allocation5 + $0x170] sm:$0xff]
    %v107 = vld [vmem:[#allocation5 + $0x178] sm:$0xff]
    %v108 = vld [vmem:[#allocation5 + $0x180] sm:$0xff]
    %v109 = vld [vmem:[#allocation5 + $0x188] sm:$0xff]
    %v110 = vld [vmem:[#allocation5 + $0x190] sm:$0xff]
    %v111 = vld [vmem:[#allocation5 + $0x198] sm:$0xff]
    %v112 = vld [vmem:[#allocation5 + $0x1a0] sm:$0xff]
    %v113 = vld [vmem:[#allocation5 + $0x1a8] sm:$0xff]
    %v114 = vld [vmem:[#allocation5 + $0x1b0] sm:$0xff]
    %v115 = vld [vmem:[#allocation5 + $0x1b8] sm:$0xff]
    %v116 = vld [vmem:[#allocation5 + $0x1c0] sm:$0xff]
    %v117 = vld [vmem:[#allocation5 + $0x1c8] sm:$0xff]
    %v118 = vld [vmem:[#allocation5 + $0x1d0] sm:$0xff]
    %v119 = vld [vmem:[#allocation5 + $0x1d8] sm:$0xff]
    %v120 = vld [vmem:[#allocation5 + $0x1e0] sm:$0xff]
    %v121 = vld [vmem:[#allocation5 + $0x1e8] sm:$0xff]
    %v122 = vld [vmem:[#allocation5 + $0x1f0] sm:$0xff]
    %v123 = vld [vmem:[#allocation5 + $0x1f8] sm:$0xff]
    %v124 = vld [vmem:[#allocation7] sm:$0xff]
    %v126 = vperm.slane %v124, 0
    %v127 = vperm.slane %v124, 1
    %v128 = vperm.slane %v124, 2
    %v129 = vperm.slane %v124, 3
    %v130 = vperm.slane %v124, 4
    %v131 = vperm.slane %v124, 5
    %v132 = vperm.slane %v124, 6
    %v133 = vperm.slane %v124, 7
    %v206 = vunpack.c.l.b16 %v60
    %v207 = vunpack.c.h.b16 %v60
    %v208 = vunpack.c.l.b16 %v61
    %v209 = vunpack.c.h.b16 %v61
    %v210 = vunpack.c.l.b16 %v62
    %v211 = vunpack.c.h.b16 %v62
    %v212 = vunpack.c.l.b16 %v63
    %v213 = vunpack.c.h.b16 %v63
    %v214 = vunpack.c.l.b16 %v64
    %v215 = vunpack.c.h.b16 %v64
    %v216 = vunpack.c.l.b16 %v65
    %v217 = vunpack.c.h.b16 %v65
    %v218 = vunpack.c.l.b16 %v66
    %v219 = vunpack.c.h.b16 %v66
    %v220 = vunpack.c.l.b16 %v67
    %v221 = vunpack.c.h.b16 %v67
    %v222 = vunpack.c.l.b16 %v68
    %v223 = vunpack.c.h.b16 %v68
    %v224 = vunpack.c.l.b16 %v69
    %v225 = vunpack.c.h.b16 %v69
    %v226 = vunpack.c.l.b16 %v70
    %v227 = vunpack.c.h.b16 %v70
    %v228 = vunpack.c.l.b16 %v71
    %v229 = vunpack.c.h.b16 %v71
    %v230 = vunpack.c.l.b16 %v72
    %v231 = vunpack.c.h.b16 %v72
    %v232 = vunpack.c.l.b16 %v73
    %v233 = vunpack.c.h.b16 %v73
    %v234 = vunpack.c.l.b16 %v74
    %v235 = vunpack.c.h.b16 %v74
    %v236 = vunpack.c.l.b16 %v75
    %v237 = vunpack.c.h.b16 %v75
    %v238 = vunpack.c.l.b16 %v76
    %v239 = vunpack.c.h.b16 %v76
    %v240 = vunpack.c.l.b16 %v77
    %v241 = vunpack.c.h.b16 %v77
    %v242 = vunpack.c.l.b16 %v78
    %v243 = vunpack.c.h.b16 %v78
    %v244 = vunpack.c.l.b16 %v79
    %v245 = vunpack.c.h.b16 %v79
    %v246 = vunpack.c.l.b16 %v80
    %v247 = vunpack.c.h.b16 %v80
    %v248 = vunpack.c.l.b16 %v81
    %v249 = vunpack.c.h.b16 %v81
    %v250 = vunpack.c.l.b16 %v82
    %v251 = vunpack.c.h.b16 %v82
    %v252 = vunpack.c.l.b16 %v83
    %v253 = vunpack.c.h.b16 %v83
    %v254 = vunpack.c.l.b16 %v84
    %v255 = vunpack.c.h.b16 %v84
    %v256 = vunpack.c.l.b16 %v85
    %v257 = vunpack.c.h.b16 %v85
    %v258 = vunpack.c.l.b16 %v86
    %v259 = vunpack.c.h.b16 %v86
    %v260 = vunpack.c.l.b16 %v87
    %v261 = vunpack.c.h.b16 %v87
    %v262 = vunpack.c.l.b16 %v88
    %v263 = vunpack.c.h.b16 %v88
    %v264 = vunpack.c.l.b16 %v89
    %v265 = vunpack.c.h.b16 %v89
    %v266 = vunpack.c.l.b16 %v90
    %v267 = vunpack.c.h.b16 %v90
    %v268 = vunpack.c.l.b16 %v91
    %v269 = vunpack.c.h.b16 %v91
    %v270 = vunpack.c.l.b16 %v92
    %v271 = vunpack.c.h.b16 %v92
    %v272 = vunpack.c.l.b16 %v93
    %v273 = vunpack.c.h.b16 %v93
    %v274 = vunpack.c.l.b16 %v94
    %v275 = vunpack.c.h.b16 %v94
    %v276 = vunpack.c.l.b16 %v95
    %v277 = vunpack.c.h.b16 %v95
    %v278 = vunpack.c.l.b16 %v96
    %v279 = vunpack.c.h.b16 %v96
    %v280 = vunpack.c.l.b16 %v97
    %v281 = vunpack.c.h.b16 %v97
    %v282 = vunpack.c.l.b16 %v98
    %v283 = vunpack.c.h.b16 %v98
    %v284 = vunpack.c.l.b16 %v99
    %v285 = vunpack.c.h.b16 %v99
    %v286 = vunpack.c.l.b16 %v100
    %v287 = vunpack.c.h.b16 %v100
    %v288 = vunpack.c.l.b16 %v101
    %v289 = vunpack.c.h.b16 %v101
    %v290 = vunpack.c.l.b16 %v102
    %v291 = vunpack.c.h.b16 %v102
    %v292 = vunpack.c.l.b16 %v103
    %v293 = vunpack.c.h.b16 %v103
    %v294 = vunpack.c.l.b16 %v104
    %v295 = vunpack.c.h.b16 %v104
    %v296 = vunpack.c.l.b16 %v105
    %v297 = vunpack.c.h.b16 %v105
    %v298 = vunpack.c.l.b16 %v106
    %v299 = vunpack.c.h.b16 %v106
    %v300 = vunpack.c.l.b16 %v107
    %v301 = vunpack.c.h.b16 %v107
    %v302 = vunpack.c.l.b16 %v108
    %v303 = vunpack.c.h.b16 %v108
    %v304 = vunpack.c.l.b16 %v109
    %v305 = vunpack.c.h.b16 %v109
    %v306 = vunpack.c.l.b16 %v110
    %v307 = vunpack.c.h.b16 %v110
    %v308 = vunpack.c.l.b16 %v111
    %v309 = vunpack.c.h.b16 %v111
    %v310 = vunpack.c.l.b16 %v112
    %v311 = vunpack.c.h.b16 %v112
    %v312 = vunpack.c.l.b16 %v113
    %v313 = vunpack.c.h.b16 %v113
    %v314 = vunpack.c.l.b16 %v114
    %v315 = vunpack.c.h.b16 %v114
    %v316 = vunpack.c.l.b16 %v115
    %v317 = vunpack.c.h.b16 %v115
    %v318 = vunpack.c.l.b16 %v116
    %v319 = vunpack.c.h.b16 %v116
    %v320 = vunpack.c.l.b16 %v117
    %v321 = vunpack.c.h.b16 %v117
    %v322 = vunpack.c.l.b16 %v118
    %v323 = vunpack.c.h.b16 %v118
    %v324 = vunpack.c.l.b16 %v119
    %v325 = vunpack.c.h.b16 %v119
    %v326 = vunpack.c.l.b16 %v120
    %v327 = vunpack.c.h.b16 %v120
    %v328 = vunpack.c.l.b16 %v121
    %v329 = vunpack.c.h.b16 %v121
    %v330 = vunpack.c.l.b16 %v122
    %v331 = vunpack.c.h.b16 %v122
    %v332 = vunpack.c.l.b16 %v123
    %v333 = vunpack.c.h.b16 %v123
    %v334 = vpack.c.b16 %v214, %v206
    %v335 = vpack.c.b16 %v215, %v207
    %v336 = vpack.c.b16 %v216, %v208
    %v337 = vpack.c.b16 %v217, %v209
    %v338 = vpack.c.b16 %v218, %v210
    %v339 = vpack.c.b16 %v219, %v211
    %v340 = vpack.c.b16 %v220, %v212
    %v341 = vpack.c.b16 %v221, %v213
    %v342 = vpack.c.b16 %v230, %v222
    %v343 = vpack.c.b16 %v231, %v223
    %v344 = vpack.c.b16 %v232, %v224
    %v345 = vpack.c.b16 %v233, %v225
    %v346 = vpack.c.b16 %v234, %v226
    %v347 = vpack.c.b16 %v235, %v227
    %v348 = vpack.c.b16 %v236, %v228
    %v349 = vpack.c.b16 %v237, %v229
    %v350 = vpack.c.b16 %v246, %v238
    %v351 = vpack.c.b16 %v247, %v239
    %v352 = vpack.c.b16 %v248, %v240
    %v353 = vpack.c.b16 %v249, %v241
    %v354 = vpack.c.b16 %v250, %v242
    %v355 = vpack.c.b16 %v251, %v243
    %v356 = vpack.c.b16 %v252, %v244
    %v357 = vpack.c.b16 %v253, %v245
    %v358 = vpack.c.b16 %v262, %v254
    %v359 = vpack.c.b16 %v263, %v255
    %v360 = vpack.c.b16 %v264, %v256
    %v361 = vpack.c.b16 %v265, %v257
    %v362 = vpack.c.b16 %v266, %v258
    %v363 = vpack.c.b16 %v267, %v259
    %v364 = vpack.c.b16 %v268, %v260
    %v365 = vpack.c.b16 %v269, %v261
    %v366 = vpack.c.b16 %v278, %v270
    %v367 = vpack.c.b16 %v279, %v271
    %v368 = vpack.c.b16 %v280, %v272
    %v369 = vpack.c.b16 %v281, %v273
    %v370 = vpack.c.b16 %v282, %v274
    %v371 = vpack.c.b16 %v283, %v275
    %v372 = vpack.c.b16 %v284, %v276
    %v373 = vpack.c.b16 %v285, %v277
    %v374 = vpack.c.b16 %v294, %v286
    %v375 = vpack.c.b16 %v295, %v287
    %v376 = vpack.c.b16 %v296, %v288
    %v377 = vpack.c.b16 %v297, %v289
    %v378 = vpack.c.b16 %v298, %v290
    %v379 = vpack.c.b16 %v299, %v291
    %v380 = vpack.c.b16 %v300, %v292
    %v381 = vpack.c.b16 %v301, %v293
    %v382 = vpack.c.b16 %v310, %v302
    %v383 = vpack.c.b16 %v311, %v303
    %v384 = vpack.c.b16 %v312, %v304
    %v385 = vpack.c.b16 %v313, %v305
    %v386 = vpack.c.b16 %v314, %v306
    %v387 = vpack.c.b16 %v315, %v307
    %v388 = vpack.c.b16 %v316, %v308
    %v389 = vpack.c.b16 %v317, %v309
    %v390 = vpack.c.b16 %v326, %v318
    %v391 = vpack.c.b16 %v327, %v319
    %v392 = vpack.c.b16 %v328, %v320
    %v393 = vpack.c.b16 %v329, %v321
    %v394 = vpack.c.b16 %v330, %v322
    %v395 = vpack.c.b16 %v331, %v323
    %v396 = vpack.c.b16 %v332, %v324
    %v397 = vpack.c.b16 %v333, %v325
    %462 = vmatpush.bf16.msra.mxu0 %v390
    %463 = vmatpush.bf16.msra.mxu0 %v382
    %464 = vmatpush.bf16.msra.mxu0 %v374
    %465 = vmatpush.bf16.msra.mxu0 %v366
    %466 = vmatpush.bf16.msra.mxu0 %v358
    %467 = vmatpush.bf16.msra.mxu0 %v350
    %468 = vmatpush.bf16.msra.mxu0 %v342
    %469 = vmatpush.bf16.msra.mxu0 %v334
    %470 = vmatmul.bf16.gmra.mxu0 %v59
    %v471 = vpop.f32.mrf.mxu0
    %v472 = vadd.f32 %v126, %v471
    %v473 = vpop.f32.mrf.mxu0
    %474 = vdwg.mxu0
    %475 = vmatpush.bf16.msra.mxu0 %v391
    %476 = vmatpush.bf16.msra.mxu0 %v383
    %477 = vmatpush.bf16.msra.mxu0 %v375
    %478 = vmatpush.bf16.msra.mxu0 %v367
    %479 = vmatpush.bf16.msra.mxu0 %v359
    %480 = vmatpush.bf16.msra.mxu0 %v351
    %481 = vmatpush.bf16.msra.mxu0 %v343
    %482 = vmatpush.bf16.msra.mxu0 %v335
    %483 = vmatmul.bf16.gmra.mxu0 %v59
    %v484 = vpop.f32.mrf.mxu0
    %v485 = vadd.f32 %v127, %v484
    %v486 = vpop.f32.mrf.mxu0
    %487 = vdwg.mxu0
    %488 = vmatpush.bf16.msra.mxu0 %v392
    %489 = vmatpush.bf16.msra.mxu0 %v384
    %490 = vmatpush.bf16.msra.mxu0 %v376
    %491 = vmatpush.bf16.msra.mxu0 %v368
    %492 = vmatpush.bf16.msra.mxu0 %v360
    %493 = vmatpush.bf16.msra.mxu0 %v352
    %494 = vmatpush.bf16.msra.mxu0 %v344
    %495 = vmatpush.bf16.msra.mxu0 %v336
    %496 = vmatmul.bf16.gmra.mxu0 %v59
    %v497 = vpop.f32.mrf.mxu0
    %v498 = vadd.f32 %v128, %v497
    %v499 = vpop.f32.mrf.mxu0
    %500 = vdwg.mxu0
    %501 = vmatpush.bf16.msra.mxu0 %v393
    %502 = vmatpush.bf16.msra.mxu0 %v385
    %503 = vmatpush.bf16.msra.mxu0 %v377
    %504 = vmatpush.bf16.msra.mxu0 %v369
    %505 = vmatpush.bf16.msra.mxu0 %v361
    %506 = vmatpush.bf16.msra.mxu0 %v353
    %507 = vmatpush.bf16.msra.mxu0 %v345
    %508 = vmatpush.bf16.msra.mxu0 %v337
    %509 = vmatmul.bf16.gmra.mxu0 %v59
    %v510 = vpop.f32.mrf.mxu0
    %v511 = vadd.f32 %v129, %v510
    %v512 = vpop.f32.mrf.mxu0
    %513 = vdwg.mxu0
    %514 = vmatpush.bf16.msra.mxu0 %v394
    %515 = vmatpush.bf16.msra.mxu0 %v386
    %516 = vmatpush.bf16.msra.mxu0 %v378
    %517 = vmatpush.bf16.msra.mxu0 %v370
    %518 = vmatpush.bf16.msra.mxu0 %v362
    %519 = vmatpush.bf16.msra.mxu0 %v354
    %520 = vmatpush.bf16.msra.mxu0 %v346
    %521 = vmatpush.bf16.msra.mxu0 %v338
    %522 = vmatmul.bf16.gmra.mxu0 %v59
    %v523 = vpop.f32.mrf.mxu0
    %v524 = vadd.f32 %v130, %v523
    %v525 = vpop.f32.mrf.mxu0
    %526 = vdwg.mxu0
    %527 = vmatpush.bf16.msra.mxu0 %v395
    %528 = vmatpush.bf16.msra.mxu0 %v387
    %529 = vmatpush.bf16.msra.mxu0 %v379
    %530 = vmatpush.bf16.msra.mxu0 %v371
    %531 = vmatpush.bf16.msra.mxu0 %v363
    %532 = vmatpush.bf16.msra.mxu0 %v355
    %533 = vmatpush.bf16.msra.mxu0 %v347
    %534 = vmatpush.bf16.msra.mxu0 %v339
    %535 = vmatmul.bf16.gmra.mxu0 %v59
    %v536 = vpop.f32.mrf.mxu0
    %v537 = vadd.f32 %v131, %v536
    %v538 = vpop.f32.mrf.mxu0
    %539 = vdwg.mxu0
    %540 = vmatpush.bf16.msra.mxu0 %v396
    %541 = vmatpush.bf16.msra.mxu0 %v388
    %542 = vmatpush.bf16.msra.mxu0 %v380
    %543 = vmatpush.bf16.msra.mxu0 %v372
    %544 = vmatpush.bf16.msra.mxu0 %v364
    %545 = vmatpush.bf16.msra.mxu0 %v356
    %546 = vmatpush.bf16.msra.mxu0 %v348
    %547 = vmatpush.bf16.msra.mxu0 %v340
    %548 = vmatmul.bf16.gmra.mxu0 %v59
    %v549 = vpop.f32.mrf.mxu0
    %v550 = vadd.f32 %v132, %v549
    %v551 = vpop.f32.mrf.mxu0
    %552 = vdwg.mxu0
    %553 = vmatpush.bf16.msra.mxu0 %v397
    %554 = vmatpush.bf16.msra.mxu0 %v389
    %555 = vmatpush.bf16.msra.mxu0 %v381
    %556 = vmatpush.bf16.msra.mxu0 %v373
    %557 = vmatpush.bf16.msra.mxu0 %v365
    %558 = vmatpush.bf16.msra.mxu0 %v357
    %559 = vmatpush.bf16.msra.mxu0 %v349
    %560 = vmatpush.bf16.msra.mxu0 %v341
    %561 = vmatmul.bf16.gmra.mxu0 %v59
    %v562 = vpop.f32.mrf.mxu0
    %v563 = vadd.f32 %v133, %v562
    %v564 = vpop.f32.mrf.mxu0
    %565 = vdwg.mxu0
    %566 = vst [vmem:[#allocation8] sm:$0xff] %v472
    %567 = vst [vmem:[#allocation8 + $0x8] sm:$0xff] %v485
    %568 = vst [vmem:[#allocation8 + $0x10] sm:$0xff] %v498
    %569 = vst [vmem:[#allocation8 + $0x18] sm:$0xff] %v511
    %570 = vst [vmem:[#allocation8 + $0x20] sm:$0xff] %v524
    %571 = vst [vmem:[#allocation8 + $0x28] sm:$0xff] %v537
    %572 = vst [vmem:[#allocation8 + $0x30] sm:$0xff] %v550
    %vm573 = vcmask 785408
    %574 = vst.msk [vmem:[#allocation8 + $0x38] sm:$0xff] %vm573, %v563
    // Predicated region
    $region26: #{_linear_pallas_impl.1} parent=1 // pred_check
      _
    $region27: #{_linear_pallas_impl.1} parent=1 // pred_check_branch
      %576 = sbr.rel (0) target = $region29
    $region28: #{_linear_pallas_impl.1} parent=1 // pred_region
      %578 = vsyncadd [#allocation4], 0
      %s580 = sshll.u32 [#allocation8], 4
      %s581 = int_to_ptr.vmem [resolvable:$true] %s580
      %s582 = sshll.u32 %s3, 4
      %s583 = int_to_ptr.hbm [resolvable:$true] %s582
      %585 = dma.vmem_to_hbm [thread:$0]  %s581, 1024, %s583, [#allocation4]
    $region29: #{_linear_pallas_impl.1} parent=1 // pred_fallthru
      _
    // Predicated region
    $region30: #{_linear_pallas_impl.1} parent=1 // pred_check
      _
    $region31: #{_linear_pallas_impl.1} parent=1 // pred_check_branch
      %587 = sbr.rel (0) target = $region33
    $region32: #{_linear_pallas_impl.1} parent=1 // pred_region
      %589 = dma.done [#allocation4], 1024
    $region33: #{_linear_pallas_impl.1} parent=1 // pred_fallthru
      _
    %590 = vsyncpa [#allocation3], 1
    %591 = vsyncpa [#allocation6], 1
    %592 = vsyncpa [#allocation4], 1

</llo_original>
